<compile_context>
chip_gen: v5e
topology: v5e:2x2
jax: 0.10.0
libtpu: 0.0.40
codegen_flags: <defaults>
</compile_context>

<pallas_src>
import functools

import jax
import jax.numpy as jnp
from jax.experimental import pallas as pl
from jax.experimental.pallas import tpu as pltpu


def gcn_kernel(xf_ref, adj_ref, w1_ref, w2_ref, b_ref, o_ref, *, n_tile):
    # xf_ref:  (Bt, Np, Dp)  full (padded) node features, resident across the row axis
    # adj_ref: (Bt, Nt, Np)  row tile of the (padded) row-normalized adjacency
    # w1_ref:  (Dp, Hp)      top half of the GraphConv weight (self features)
    # w2_ref:  (Dp, Hp)      bottom half (mean-aggregated features)
    # b_ref:   (1, Hp)       bias (f32)
    # o_ref:   (Bt, Nt, Hp)  output row tile
    x_full = xf_ref[...]

    # MeanAggregator: adj @ x (adj already row-normalized). Batched -> einsum on MXU,
    # f32 accumulation.
    agg = jnp.einsum('bij,bjd->bid', adj_ref[...], x_full,
                     preferred_element_type=jnp.float32)

    # Self-term row tile: sliced from the resident block (no second HBM read of x).
    row_start = pl.multiple_of(pl.program_id(1) * n_tile, n_tile)
    x_rows = xf_ref[:, pl.ds(row_start, n_tile), :]

    # GraphConv: concat([x, agg]) @ W + b == x @ W1 + agg @ W2 + b (f32 epilogue).
    out = (jnp.einsum('bnd,dh->bnh', x_rows, w1_ref[...],
                      preferred_element_type=jnp.float32)
           + jnp.einsum('bnd,dh->bnh', agg.astype(w2_ref.dtype), w2_ref[...],
                        preferred_element_type=jnp.float32)
           + b_ref[...])

    # ReLU (dropout=0 in the module -> identity).
    o_ref[...] = jnp.maximum(out, 0.0).astype(o_ref.dtype)


def _round_up(v, m):
    return ((v + m - 1) // m) * m


def _vmem_capacity_bytes():
    """Per-core VMEM capacity; conservative v7x default if the query is unavailable."""
    try:
        cap = getattr(pltpu.get_tpu_info(), "vmem_capacity_bytes", None)
        if cap:
            return int(cap)
    except Exception:
        pass
    return 64 << 20


def _pad_cast(arr, shape, dtype):
    """Cast and zero-pad `arr` to `shape`; no pad pass if the shape is already aligned."""
    if tuple(arr.shape) == tuple(shape):
        return arr.astype(dtype)
    out = jnp.zeros(shape, dtype)
    return out.at[tuple(slice(0, s) for s in arr.shape)].set(arr.astype(dtype))


def _choose_tiles(B, Np, Dp, Hp, in_bytes, out_bytes, budget_bytes):
    """Largest (batch tile, node-row tile) whose double-buffered blocks fit the budget,
    keeping >= 2 programs on a parallel grid axis when the shape allows it."""

    def usage(bt, nt):
        xf = 2 * bt * Np * Dp * in_bytes          # resident full features (double-buffered)
        adj = 2 * bt * nt * Np * in_bytes         # row-tiled adjacency (dominant stream)
        w = 2 * 2 * Dp * Hp * in_bytes            # both weight halves
        bias = 2 * Hp * 4
        o = 2 * bt * nt * Hp * out_bytes
        # f32 agg + f32 epilogue accumulator + sliced self rows
        tmp = bt * nt * (2 * Dp + Hp) * 4 + bt * nt * Dp * in_bytes
        return xf + adj + w + bias + o + tmp

    # Node-row tile: largest 128-multiple divisor of Np that fits with bt=1.  When B == 1
    # the row axis is the only parallel axis, so keep at least two row tiles if possible.
    need_row_split = (B == 1 and Np >= 256)
    nt = None
    for cand in range(Np, 0, -128):
        if Np % cand:
            continue
        if need_row_split and Np // cand < 2:
            continue
        if usage(1, cand) <= budget_bytes:
            nt = cand
            break
    if nt is None:
        # TODO(synk): K-tile the aggregation (chunk the Np contraction with an f32 VMEM
        # accumulator + pl.when epilogue) so very large graphs fit; the current structure
        # needs a full-Np adjacency row tile plus the resident feature block in VMEM.
        raise ValueError(
            "GCN Pallas kernel: even a (1, 128, %d) adjacency tile plus the resident "
            "feature block exceeds the %d MiB VMEM budget." % (Np, budget_bytes >> 20))

    # Batch tile: largest divisor of B that fits while leaving >= 2 programs on the batch
    # axis (v7x shards parallel grid axes across its two TensorCores).
    bt = 1
    for cand in range(B, 0, -1):
        if B % cand:
            continue
        if B >= 2 and B // cand < 2:
            continue
        if usage(cand, nt) <= budget_bytes:
            bt = cand
            break
    return bt, nt


def gcn_forward(x, adj, weight, bias, *, compute_dtype=jnp.bfloat16):
    """x: (B, N, D), adj: (B, N, N) row-normalized, weight: (2D, H), bias: (H,) -> (B, N, H)."""
    B, N, D = x.shape
    H = weight.shape[1]
    out_dtype = x.dtype
    cdt = jnp.dtype(compute_dtype)

    # Lane/MXU-aligned sizes. Zero padding keeps the math exact (padded rows/cols are
    # zeros); the pad pass is skipped entirely for already-aligned shapes.
    Np = _round_up(N, 128)
    Dp = _round_up(D, 128)
    Hp = _round_up(H, 128)

    x_p = _pad_cast(x, (B, Np, Dp), cdt)
    adj_p = _pad_cast(adj, (B, Np, Np), cdt)
    w1_p = _pad_cast(weight[:D, :], (Dp, Hp), cdt)
    w2_p = _pad_cast(weight[D:, :], (Dp, Hp), cdt)
    b_p = _pad_cast(bias.reshape(1, H), (1, Hp), jnp.float32)

    in_bytes = cdt.itemsize
    out_bytes = jnp.dtype(out_dtype).itemsize

    vmem_cap = _vmem_capacity_bytes()
    budget = int(vmem_cap * 0.625)     # ~40 MiB on v7x (64 MiB), ~80 MiB on v5e/v6e (128 MiB)
    vmem_limit = int(vmem_cap * 0.85)  # ~54 MiB on v7x, ~108 MiB on v5e/v6e

    Bt, Nt = _choose_tiles(B, Np, Dp, Hp, in_bytes, out_bytes, budget)
    grid = (B // Bt, Np // Nt)

    flops = 2 * B * (Np * Np * Dp + Np * 2 * Dp * Hp)
    bytes_accessed = ((x_p.size + adj_p.size + w1_p.size + w2_p.size) * in_bytes
                      + b_p.size * 4 + B * Np * Hp * out_bytes)

    kernel = functools.partial(gcn_kernel, n_tile=Nt)

    out_p = pl.pallas_call(
        kernel,
        out_shape=jax.ShapeDtypeStruct((B, Np, Hp), out_dtype),
        grid_spec=pltpu.PrefetchScalarGridSpec(
            num_scalar_prefetch=0,
            grid=grid,
            in_specs=[
                # Full features: resident across the row-tile axis (same block for all ri).
                pl.BlockSpec((Bt, Np, Dp), lambda bi, ri: (bi, 0, 0)),
                # Row-tiled adjacency (dominant HBM traffic).
                pl.BlockSpec((Bt, Nt, Np), lambda bi, ri: (bi, ri, 0)),
                pl.BlockSpec((Dp, Hp), lambda bi, ri: (0, 0)),
                pl.BlockSpec((Dp, Hp), lambda bi, ri: (0, 0)),
                pl.BlockSpec((1, Hp), lambda bi, ri: (0, 0)),
            ],
            out_specs=pl.BlockSpec((Bt, Nt, Hp), lambda bi, ri: (bi, ri, 0)),
        ),
        compiler_params=pltpu.CompilerParams(
            dimension_semantics=("parallel", "parallel"),
            vmem_limit_bytes=vmem_limit,
        ),
        cost_estimate=pl.CostEstimate(
            flops=flops, transcendentals=0, bytes_accessed=bytes_accessed),
    )(x_p, adj_p, w1_p, w2_p, b_p)

    if Np != N or Hp != H:
        return out_p[:, :N, :H]
    return out_p


if __name__ == "__main__":
    B, N = 2, 16          # batch, nodes
    feature_dim = 8
    nhid = 16

    key = jax.random.PRNGKey(0)
    kx, kadj, kw = jax.random.split(key, 3)

    # Node features
    x = jax.random.normal(kx, (B, N, feature_dim), dtype=jnp.float32)

    # Row-normalized adjacency (so adj @ x is a mean aggregation)
    raw = jax.random.uniform(kadj, (B, N, N), dtype=jnp.float32)
    adj = raw / jnp.sum(raw, axis=-1, keepdims=True)

    # GraphConv parameters: weight (2*feature_dim, nhid) Xavier-uniform, bias = 0
    fan_in, fan_out = 2 * feature_dim, nhid
    limit = (6.0 / (fan_in + fan_out)) ** 0.5
    weight = jax.random.uniform(kw, (fan_in, fan_out), dtype=jnp.float32,
                                minval=-limit, maxval=limit)
    bias = jnp.zeros((nhid,), dtype=jnp.float32)

    # Pure-JAX reference of the module's forward pass.
    agg_ref = jnp.einsum('bij,bjd->bid', adj, x)
    cat_ref = jnp.concatenate([x, agg_ref], axis=-1)
    ref = jax.nn.relu(jnp.einsum('bnd,df->bnf', cat_ref, weight) + bias)

    # Exact-semantics run (f32 matmul operands).
    out_f32 = jax.block_until_ready(
        gcn_forward(x, adj, weight, bias, compute_dtype=jnp.float32))
    assert out_f32.shape == (B, N, nhid)
    assert jnp.allclose(out_f32, ref, atol=1e-5, rtol=1e-5)

    # Performance configuration (bf16 MXU operands, f32 accumulation, f32 epilogue).
    out_bf16 = jax.block_until_ready(
        gcn_forward(x, adj, weight, bias, compute_dtype=jnp.bfloat16))
    assert out_bf16.shape == (B, N, nhid)
    assert jnp.allclose(out_bf16, ref, atol=3e-2, rtol=3e-2)

    print("KERNEL_OK")
</pallas_src>

<mosaic_0001>
module attributes {stable_mosaic.version = 11 : i64} {
  func.func @gcn_kernel(%arg0: i32, %arg1: i32, %arg2: memref<1x128x128xf32, #tpu.memory_space<vmem>>, %arg3: memref<1x128x128xf32, #tpu.memory_space<vmem>>, %arg4: memref<128x128xf32, #tpu.memory_space<vmem>>, %arg5: memref<128x128xf32, #tpu.memory_space<vmem>>, %arg6: memref<1x128xf32, #tpu.memory_space<vmem>>, %arg7: memref<1x128x128xf32, #tpu.memory_space<vmem>>) attributes {dimension_semantics = [#tpu.dimension_semantics<parallel>, #tpu.dimension_semantics<parallel>], iteration_bounds = array<i64: 2, 1>, scalar_prefetch = 0 : i64, scratch_operands = 0 : i64, tpu.core_type = #tpu.core_type<tc>, window_params = [{transform_indices = @transform_0, window_bounds = array<i64: 1, 128, 128>}, {transform_indices = @transform_1, window_bounds = array<i64: 1, 128, 128>}, {pipeline_mode = #tpu.pipeline_mode<synchronous>, transform_indices = @transform_2, window_bounds = array<i64: 128, 128>}, {pipeline_mode = #tpu.pipeline_mode<synchronous>, transform_indices = @transform_3, window_bounds = array<i64: 128, 128>}, {pipeline_mode = #tpu.pipeline_mode<synchronous>, transform_indices = @transform_4, window_bounds = array<i64: 1, 128>}, {transform_indices = @transform_5, window_bounds = array<i64: 1, 128, 128>}]} {
    %c0 = arith.constant 0 : index
    %c0_0 = arith.constant 0 : index
    %c0_1 = arith.constant 0 : index
    %0 = vector.load %arg2[%c0, %c0_0, %c0_1] : memref<1x128x128xf32, #tpu.memory_space<vmem>>, vector<1x128x128xf32>
    %c0_2 = arith.constant 0 : index
    %c0_3 = arith.constant 0 : index
    %c0_4 = arith.constant 0 : index
    %1 = vector.load %arg3[%c0_2, %c0_3, %c0_4] : memref<1x128x128xf32, #tpu.memory_space<vmem>>, vector<1x128x128xf32>
    "tpu.trace_start"() <{level = 10 : i32, message = "bij,bjd->bid"}> : () -> ()
    %cst = arith.constant dense<0.000000e+00> : vector<1x128x128xf32>
    %2 = tpu.matmul %1, %0, %cst {dimension_numbers = #tpu.dot_dimension_numbers<[2], [1], [1], [2], [0, 0, 0, 1, 1, 2], [0], [0]>} : vector<1x128x128xf32>, vector<1x128x128xf32>, vector<1x128x128xf32> -> vector<1x128x128xf32>
    "tpu.trace_stop"() : () -> ()
    %c128_i32 = arith.constant 128 : i32
    %3 = arith.muli %arg1, %c128_i32 : i32
    %4 = tpu.assume_multiple %3, 128 : i32
    %c0_5 = arith.constant 0 : index
    %5 = arith.index_cast %4 : i32 to index
    %c0_6 = arith.constant 0 : index
    %6 = vector.load %arg2[%c0_5, %5, %c0_6] : memref<1x128x128xf32, #tpu.memory_space<vmem>>, vector<1x128x128xf32>
    %c0_7 = arith.constant 0 : index
    %c0_8 = arith.constant 0 : index
    %7 = vector.load %arg4[%c0_7, %c0_8] : memref<128x128xf32, #tpu.memory_space<vmem>>, vector<128x128xf32>
    "tpu.trace_start"() <{level = 10 : i32, message = "bnd,dh->bnh"}> : () -> ()
    %cst_9 = arith.constant dense<0.000000e+00> : vector<1x128x128xf32>
    %8 = tpu.matmul %6, %7, %cst_9 {dimension_numbers = #tpu.dot_dimension_numbers<[2], [0], [0, 1], [1], [0, 0, 0, 1, 1, 1], [], []>} : vector<1x128x128xf32>, vector<128x128xf32>, vector<1x128x128xf32> -> vector<1x128x128xf32>
    "tpu.trace_stop"() : () -> ()
    %c0_10 = arith.constant 0 : index
    %c0_11 = arith.constant 0 : index
    %9 = vector.load %arg5[%c0_10, %c0_11] : memref<128x128xf32, #tpu.memory_space<vmem>>, vector<128x128xf32>
    "tpu.trace_start"() <{level = 10 : i32, message = "bnd,dh->bnh"}> : () -> ()
    %cst_12 = arith.constant dense<0.000000e+00> : vector<1x128x128xf32>
    %10 = tpu.matmul %2, %9, %cst_12 {dimension_numbers = #tpu.dot_dimension_numbers<[2], [0], [0, 1], [1], [0, 0, 0, 1, 1, 1], [], []>} : vector<1x128x128xf32>, vector<128x128xf32>, vector<1x128x128xf32> -> vector<1x128x128xf32>
    "tpu.trace_stop"() : () -> ()
    %11 = arith.addf %8, %10 : vector<1x128x128xf32>
    %c0_13 = arith.constant 0 : index
    %c0_14 = arith.constant 0 : index
    %12 = vector.load %arg6[%c0_13, %c0_14] : memref<1x128xf32, #tpu.memory_space<vmem>>, vector<1x128xf32>
    %13 = vector.shape_cast %12 : vector<1x128xf32> to vector<1x1x128xf32>
    %14 = vector.broadcast %13 : vector<1x1x128xf32> to vector<1x128x128xf32>
    %15 = arith.addf %11, %14 : vector<1x128x128xf32>
    %cst_15 = arith.constant 0.000000e+00 : f32
    %16 = vector.broadcast %cst_15 : f32 to vector<1x128x128xf32>
    %17 = arith.maximumf %15, %16 : vector<1x128x128xf32>
    %c0_16 = arith.constant 0 : index
    %c0_17 = arith.constant 0 : index
    %c0_18 = arith.constant 0 : index
    %18 = vector.load %arg7[%c0_16, %c0_17, %c0_18] : memref<1x128x128xf32, #tpu.memory_space<vmem>>, vector<1x128x128xf32>
    tpu.vector_store %arg7[%c0_16, %c0_17, %c0_18], %17 {strides = array<i32>} : memref<1x128x128xf32, #tpu.memory_space<vmem>>, vector<1x128x128xf32>,
    return
  }
  func.func @transform_0(%arg0: i32, %arg1: i32) -> (i32, i32, i32) {
    %c0_i32 = arith.constant 0 : i32
    %c0_i32_0 = arith.constant 0 : i32
    %c0_i32_1 = arith.constant 0 : i32
    return %arg0, %c0_i32, %c0_i32_0 : i32, i32, i32
  }
  func.func @transform_1(%arg0: i32, %arg1: i32) -> (i32, i32, i32) {
    %c0_i32 = arith.constant 0 : i32
    %c0_i32_0 = arith.constant 0 : i32
    return %arg0, %arg1, %c0_i32 : i32, i32, i32
  }
  func.func @transform_2(%arg0: i32, %arg1: i32) -> (i32, i32) {
    %c0_i32 = arith.constant 0 : i32
    %c0_i32_0 = arith.constant 0 : i32
    %c0_i32_1 = arith.constant 0 : i32
    return %c0_i32, %c0_i32_0 : i32, i32
  }
  func.func @transform_3(%arg0: i32, %arg1: i32) -> (i32, i32) {
    %c0_i32 = arith.constant 0 : i32
    %c0_i32_0 = arith.constant 0 : i32
    %c0_i32_1 = arith.constant 0 : i32
    return %c0_i32, %c0_i32_0 : i32, i32
  }
  func.func @transform_4(%arg0: i32, %arg1: i32) -> (i32, i32) {
    %c0_i32 = arith.constant 0 : i32
    %c0_i32_0 = arith.constant 0 : i32
    %c0_i32_1 = arith.constant 0 : i32
    return %c0_i32, %c0_i32_0 : i32, i32
  }
  func.func @transform_5(%arg0: i32, %arg1: i32) -> (i32, i32, i32) {
    %c0_i32 = arith.constant 0 : i32
    %c0_i32_0 = arith.constant 0 : i32
    return %arg0, %arg1, %c0_i32 : i32, i32, i32
  }
}

</mosaic_0001>

<llo_original>
// kernel: tpu_custom_call.1
$region0: #{tpu_custom_call.1}
  #allocation0 [shape = 'u32[]', space=smem, size = 0x4, offset = 0x4, fixed_abs, tag = 'smem constant byte address 0x4 - core index']
  #allocation1 [shape = 'u32[72,128]{1,0:T(1,128)}', space=vmem, size = 0x9000, scoped, tag = 'internal scratch']
  %s0 = inlined_call_operand.hbm [shape: f32[2,128,128], index: 0, kind: input, shape index: {}]
  %s1 = inlined_call_operand.hbm [shape: f32[2,128,128], index: 1, kind: input, shape index: {}]
  %s2 = inlined_call_operand.hbm [shape: f32[128,128], index: 2, kind: input, shape index: {}]
  %s3 = inlined_call_operand.hbm [shape: f32[128,128], index: 3, kind: input, shape index: {}]
  %s4 = inlined_call_operand.vmem [shape: f32[1,128], index: 4, kind: input, shape index: {}]
  %s5 = inlined_call_operand.hbm [shape: f32[2,128,128], index: 5, kind: output, shape index: {}]
  %s6 = sld [smem:[#allocation0]]
  $region69: #{tpu_custom_call.1} parent=0
    _
  %s8 = ssub.s32 1, %s6
  %s9 = scalar_select 0, %s8, %s6
  $region1: #{tpu_custom_call.1} parent=0
    #allocation2 [shape = 'u8[131072]{0}', space=vmem, size = 0x20000, scoped, tag = 'input window, operand 0']
    #allocation3 [shape = 's32[2]{0}', space=sflag, size = 0x8, scoped, tag = 'scoped memory for tpu_custom_call.1']
    #allocation4 [shape = 's32[2]{0}', space=sflag, size = 0x8, scoped, tag = 'scoped memory for tpu_custom_call.1']
    #allocation5 [shape = 'u8[131072]{0}', space=vmem, size = 0x20000, scoped, tag = 'input window, operand 1']
    #allocation6 [shape = 's32[2]{0}', space=sflag, size = 0x8, scoped, tag = 'scoped memory for tpu_custom_call.1']
    #allocation7 [shape = 'u8[65536]{0}', space=vmem, size = 0x10000, scoped, tag = 'input window, operand 2, single buffered']
    #allocation8 [shape = 'u8[65536]{0}', space=vmem, size = 0x10000, scoped, tag = 'input window, operand 3, single buffered']
    #allocation9 [shape = 's32[1]{0}', space=sflag, size = 0x4, scoped, tag = 'scoped memory for tpu_custom_call.1']
    #allocation10 [shape = 'u8[131072]{0}', space=vmem, size = 0x20000, scoped, tag = 'output window, operand 0']
    %10 = vsyncpa [#allocation3], 0
    %s11 = scalar_lea.sflag [#allocation3], 1
    %12 = vsyncpa %s11, 0
    %13 = vsyncpa [#allocation6], 0
    %s14 = scalar_lea.sflag [#allocation6], 1
    %15 = vsyncpa %s14, 0
    %16 = vsyncpa [#allocation9], 0
    %17 = vsyncpa [#allocation4], 0
    %s18 = scalar_lea.sflag [#allocation4], 1
    %19 = vsyncpa %s18, 0
    loop: start=0, step=1, limit=4
    $region2: #{tpu_custom_call.1} parent=1 // loop_pre_header
      _
    $region3: #{tpu_custom_call.1} parent=1 // loop_header
      %s21 = sphi 0, %s25
      %p22 = scmp.ge.s32.totalorder %s21, 4
      %s28 = sphi 0, %s40
      %s29 = sphi 0, %s36
      %s30 = sphi 0, %s28
      %s31 = sphi 0, %s29
      %s32 = sphi 0, %s30
      %s33 = sphi 0, %s31
      %s43 = sphi 0, %s45
      %s46 = sphi 0, %s43
      %s47 = sphi 0, %s46
      %s63 = sphi 0, %s47
      %s71 = sphi 0, %s73
      %s74 = sphi 0, %s71
      %s75 = sphi 0, %s74
      %s91 = sphi 0, %s75
      %s95 = sphi 0, %s95
      %s97 = sphi 0, %s95
      %s98 = sphi 0, %s97
      %s112 = sphi 0, %s98
      %s116 = sphi 0, %s116
      %s118 = sphi 0, %s116
      %s119 = sphi 0, %s118
      %s133 = sphi 0, %s119
      %s137 = sphi 0, %s137
      %s139 = sphi 0, %s137
      %s140 = sphi 0, %s139
      %s154 = sphi 0, %s140
      %s162 = sphi 0, %s164
      %s165 = sphi 0, %s162
      %s166 = sphi 0, %s165
      %s182 = sphi 0, %s166
    $region4: #{tpu_custom_call.1} parent=1 // loop_header_branch
      %24 = sbr.rel (%p22) target = $region8
    $region5: #{tpu_custom_call.1} parent=1 // loop_body
      %s26 = ssub.s32 %s21, 1
      %s27 = ssub.s32 %s21, 2
      %s34 = sadd.s32 1, %s29
      %p35 = scmp.ge.s32.totalorder %s34, 1
      %s36 = scalar_select %p35, 0, %s34
      %s37 = sadd.s32 1, %s28
      %s38 = scalar_select %p35, %s37, %s28
      %p39 = scmp.ge.s32.totalorder %s38, 2
      %s40 = scalar_select %p39, 0, %s38
      %s41 = ssub.s32 %s28, %s40
      %p42 = scmp.eq.s32.totalorder %s41, 0
      %s44 = sadd.s32 %s43, 1
      %s45 = scalar_select %p42, %s43, %s44
      %p48 = pneg %p42
      %p49 = scmp.eq.s32.totalorder %s21, 1
      %p50 = por %p48, %p49
      %p51 = scmp.ne.s32.totalorder %s43, %s46
      %p52 = scmp.eq.s32.totalorder %s21, 0
      %p53 = por %p51, %p52
      %p54 = scmp.ne.s32.totalorder %s43, %s46
      %p55 = scmp.eq.s32.totalorder %s26, 1
      %p56 = por %p54, %p55
      %p57 = scmp.ne.s32.totalorder %s46, %s47
      %p58 = scmp.eq.s32.totalorder %s26, 0
      %p59 = por %p57, %p58
      %p60 = scmp.ne.s32.totalorder %s46, %s47
      %p61 = scmp.eq.s32.totalorder %s27, 1
      %p62 = por %p60, %p61
      %p64 = scmp.ne.s32.totalorder %s47, %s63
      %p65 = scmp.eq.s32.totalorder %s27, 0
      %p66 = por %p64, %p65
      %s67 = ssub.s32 %s28, %s40
      %s68 = ssub.s32 %s29, %s36
      %s69 = sor.u32 %s67, %s68
      %p70 = scmp.eq.s32.totalorder %s69, 0
      %s72 = sadd.s32 %s71, 1
      %s73 = scalar_select %p70, %s71, %s72
      %p76 = pneg %p70
      %p77 = scmp.eq.s32.totalorder %s21, 1
      %p78 = por %p76, %p77
      %p79 = scmp.ne.s32.totalorder %s71, %s74
      %p80 = scmp.eq.s32.totalorder %s21, 0
      %p81 = por %p79, %p80
      %p82 = scmp.ne.s32.totalorder %s71, %s74
      %p83 = scmp.eq.s32.totalorder %s26, 1
      %p84 = por %p82, %p83
      %p85 = scmp.ne.s32.totalorder %s74, %s75
      %p86 = scmp.eq.s32.totalorder %s26, 0
      %p87 = por %p85, %p86
      %p88 = scmp.ne.s32.totalorder %s74, %s75
      %p89 = scmp.eq.s32.totalorder %s27, 1
      %p90 = por %p88, %p89
      %p92 = scmp.ne.s32.totalorder %s75, %s91
      %p93 = scmp.eq.s32.totalorder %s27, 0
      %p94 = por %p92, %p93
      %s96 = sadd.s32 %s95, 1
      %p99 = scmp.eq.s32.totalorder %s21, 1
      %p100 = scmp.ne.s32.totalorder %s95, %s97
      %p101 = scmp.eq.s32.totalorder %s21, 0
      %p102 = por %p100, %p101
      %p103 = scmp.ne.s32.totalorder %s95, %s97
      %p104 = scmp.eq.s32.totalorder %s26, 1
      %p105 = por %p103, %p104
      %p106 = scmp.ne.s32.totalorder %s97, %s98
      %p107 = scmp.eq.s32.totalorder %s26, 0
      %p108 = por %p106, %p107
      %p109 = scmp.ne.s32.totalorder %s97, %s98
      %p110 = scmp.eq.s32.totalorder %s27, 1
      %p111 = por %p109, %p110
      %p113 = scmp.ne.s32.totalorder %s98, %s112
      %p114 = scmp.eq.s32.totalorder %s27, 0
      %p115 = por %p113, %p114
      %s117 = sadd.s32 %s116, 1
      %p120 = scmp.eq.s32.totalorder %s21, 1
      %p121 = scmp.ne.s32.totalorder %s116, %s118
      %p122 = scmp.eq.s32.totalorder %s21, 0
      %p123 = por %p121, %p122
      %p124 = scmp.ne.s32.totalorder %s116, %s118
      %p125 = scmp.eq.s32.totalorder %s26, 1
      %p126 = por %p124, %p125
      %p127 = scmp.ne.s32.totalorder %s118, %s119
      %p128 = scmp.eq.s32.totalorder %s26, 0
      %p129 = por %p127, %p128
      %p130 = scmp.ne.s32.totalorder %s118, %s119
      %p131 = scmp.eq.s32.totalorder %s27, 1
      %p132 = por %p130, %p131
      %p134 = scmp.ne.s32.totalorder %s119, %s133
      %p135 = scmp.eq.s32.totalorder %s27, 0
      %p136 = por %p134, %p135
      %s138 = sadd.s32 %s137, 1
      %p141 = scmp.eq.s32.totalorder %s21, 1
      %p142 = scmp.ne.s32.totalorder %s137, %s139
      %p143 = scmp.eq.s32.totalorder %s21, 0
      %p144 = por %p142, %p143
      %p145 = scmp.ne.s32.totalorder %s137, %s139
      %p146 = scmp.eq.s32.totalorder %s26, 1
      %p147 = por %p145, %p146
      %p148 = scmp.ne.s32.totalorder %s139, %s140
      %p149 = scmp.eq.s32.totalorder %s26, 0
      %p150 = por %p148, %p149
      %p151 = scmp.ne.s32.totalorder %s139, %s140
      %p152 = scmp.eq.s32.totalorder %s27, 1
      %p153 = por %p151, %p152
      %p155 = scmp.ne.s32.totalorder %s140, %s154
      %p156 = scmp.eq.s32.totalorder %s27, 0
      %p157 = por %p155, %p156
      %s158 = ssub.s32 %s28, %s40
      %s159 = ssub.s32 %s29, %s36
      %s160 = sor.u32 %s158, %s159
      %p161 = scmp.eq.s32.totalorder %s160, 0
      %s163 = sadd.s32 %s162, 1
      %s164 = scalar_select %p161, %s162, %s163
      %p167 = pneg %p161
      %p168 = scmp.eq.s32.totalorder %s21, 1
      %p169 = por %p167, %p168
      %p170 = scmp.ne.s32.totalorder %s162, %s165
      %p171 = scmp.eq.s32.totalorder %s21, 0
      %p172 = por %p170, %p171
      %p173 = scmp.ne.s32.totalorder %s162, %s165
      %p174 = scmp.eq.s32.totalorder %s26, 1
      %p175 = por %p173, %p174
      %p176 = scmp.ne.s32.totalorder %s165, %s166
      %p177 = scmp.eq.s32.totalorder %s26, 0
      %p178 = por %p176, %p177
      %p179 = scmp.ne.s32.totalorder %s165, %s166
      %p180 = scmp.eq.s32.totalorder %s27, 1
      %p181 = por %p179, %p180
      %p183 = scmp.ne.s32.totalorder %s166, %s182
      %p184 = scmp.eq.s32.totalorder %s27, 0
      %p185 = por %p183, %p184
      %p186 = scmp.le.s32.totalorder 1, %s21
      %p187 = scmp.lt.s32.totalorder %s21, 3
      %p188 = pnand %p186, %p187
      %p189 = pneg %p188
      // Predicated region
      $region9: #{tpu_custom_call.1} parent=5 // pred_check
        _
      $region10: #{tpu_custom_call.1} parent=5 // pred_check_branch
        %191 = sbr.rel (%p188) target = $region12
      $region11: #{tpu_custom_call.1} parent=5 // pred_region
        %s192 = ssub.s32 %s21, 1
        // Predicated region
        $region13: #{tpu_custom_call.1} parent=11 // pred_check
          %p193 = pneg %p108
        $region14: #{tpu_custom_call.1} parent=11 // pred_check_branch
          %195 = sbr.rel (%p193) target = $region16
        $region15: #{tpu_custom_call.1} parent=11 // pred_region
          %197 = vsyncadd [#allocation6], 0
          %s198 = sshll.u32 %s2, 4
          %s199 = int_to_ptr.hbm [resolvable:$true] %s198
          %s200 = sshll.u32 [#allocation7], 4
          %s201 = int_to_ptr.vmem [resolvable:$true] %s200
          %206 = dma.hbm_to_vmem [thread:$0]  %s199, 2048, %s201, [#allocation6], 128, 128, 8
        $region16: #{tpu_custom_call.1} parent=11 // pred_fallthru
          _
        // Predicated region
        $region17: #{tpu_custom_call.1} parent=11 // pred_check
          %p207 = pneg %p129
        $region18: #{tpu_custom_call.1} parent=11 // pred_check_branch
          %209 = sbr.rel (%p207) target = $region20
        $region19: #{tpu_custom_call.1} parent=11 // pred_region
          %211 = vsyncadd [#allocation9], 0
          %s212 = sshll.u32 %s3, 4
          %s213 = int_to_ptr.hbm [resolvable:$true] %s212
          %s214 = sshll.u32 [#allocation8], 4
          %s215 = int_to_ptr.vmem [resolvable:$true] %s214
          %220 = dma.hbm_to_vmem [thread:$0]  %s213, 2048, %s215, [#allocation9], 128, 128, 8
        $region20: #{tpu_custom_call.1} parent=11 // pred_fallthru
          _
        // Predicated region
        $region21: #{tpu_custom_call.1} parent=11 // pred_check
          %p221 = pneg %p150
        $region22: #{tpu_custom_call.1} parent=11 // pred_check_branch
          %223 = sbr.rel (%p221) target = $region24
        $region23: #{tpu_custom_call.1} parent=11 // pred_region
          _
        $region24: #{tpu_custom_call.1} parent=11 // pred_fallthru
          _
      $region12: #{tpu_custom_call.1} parent=5 // pred_fallthru
        _
      %p224 = scmp.lt.s32.totalorder %s21, 2
      // Predicated region
      $region25: #{tpu_custom_call.1} parent=5 // pred_check
        %p225 = pneg %p224
      $region26: #{tpu_custom_call.1} parent=5 // pred_check_branch
        %227 = sbr.rel (%p225) target = $region28
      $region27: #{tpu_custom_call.1} parent=5 // pred_region
        // Predicated region
        $region29: #{tpu_custom_call.1} parent=27 // pred_check
          %p228 = pneg %p53
        $region30: #{tpu_custom_call.1} parent=27 // pred_check_branch
          %230 = sbr.rel (%p228) target = $region32
        $region31: #{tpu_custom_call.1} parent=27 // pred_region
          %s231 = sand.u32 %s43, 1
          %s232 = scalar_lea.sflag [#allocation3], %s231
          %s233 = sand.u32 %s43, 1
          %s234 = smul.addr %s233, 128
          %s235 = scalar_lea.vmem [#allocation2], %s234
          %237 = vsyncadd %s232, 0
          %s238 = smul.addr %s28, 16
          %s239 = smul.addr %s238, 8
          %s240 = scalar_lea.hbm %s0, %s239
          %s241 = sshll.u32 %s240, 4
          %s242 = int_to_ptr.hbm [resolvable:$true] %s241
          %s243 = sshll.u32 %s235, 4
          %s244 = int_to_ptr.vmem [resolvable:$true] %s243
          %249 = dma.hbm_to_vmem [thread:$0]  %s242, 2048, %s244, %s232, 128, 128, 8
        $region32: #{tpu_custom_call.1} parent=27 // pred_fallthru
          _
        // Predicated region
        $region33: #{tpu_custom_call.1} parent=27 // pred_check
          %p250 = pneg %p81
        $region34: #{tpu_custom_call.1} parent=27 // pred_check_branch
          %252 = sbr.rel (%p250) target = $region36
        $region35: #{tpu_custom_call.1} parent=27 // pred_region
          %s253 = sand.u32 %s21, 1
          %s254 = scalar_lea.sflag [#allocation6], %s253
          %s255 = sand.u32 %s71, 1
          %s256 = smul.addr %s255, 128
          %s257 = scalar_lea.vmem [#allocation5], %s256
          %s258 = smul.u32 16, %s29
          %260 = vsyncadd %s254, 0
          %s261 = smul.addr %s28, 16
          %s262 = sadd.s32 %s258, %s261
          %s263 = smul.addr %s262, 8
          %s264 = scalar_lea.hbm %s1, %s263
          %s265 = sshll.u32 %s264, 4
          %s266 = int_to_ptr.hbm [resolvable:$true] %s265
          %s267 = sshll.u32 %s257, 4
          %s268 = int_to_ptr.vmem [resolvable:$true] %s267
          %273 = dma.hbm_to_vmem [thread:$0]  %s266, 2048, %s268, %s254, 128, 128, 8
        $region36: #{tpu_custom_call.1} parent=27 // pred_fallthru
          _
      $region28: #{tpu_custom_call.1} parent=5 // pred_fallthru
        _
      %p274 = scmp.le.s32.totalorder 1, %s21
      %p275 = scmp.lt.s32.totalorder %s21, 3
      %p276 = pnand %p274, %p275
      %p277 = pneg %p276
      // Predicated region
      $region37: #{tpu_custom_call.1} parent=5 // pred_check
        _
      $region38: #{tpu_custom_call.1} parent=5 // pred_check_branch
        %279 = sbr.rel (%p276) target = $region40
      $region39: #{tpu_custom_call.1} parent=5 // pred_region
        %s280 = ssub.s32 %s21, 1
        %s281 = sand.u32 %s46, 1
        %s282 = scalar_lea.sflag [#allocation3], %s281
        %s283 = sand.u32 %s46, 1
        %s284 = smul.addr %s283, 128
        %s285 = scalar_lea.vmem [#allocation2], %s284
        // Predicated region
        $region41: #{tpu_custom_call.1} parent=39 // pred_check
          %p286 = pneg %p59
        $region42: #{tpu_custom_call.1} parent=39 // pred_check_branch
          %288 = sbr.rel (%p286) target = $region44
        $region43: #{tpu_custom_call.1} parent=39 // pred_region
          %290 = dma.done %s282, 2048
        $region44: #{tpu_custom_call.1} parent=39 // pred_fallthru
          _
        %s291 = sand.u32 %s26, 1
        %s292 = scalar_lea.sflag [#allocation6], %s291
        %s293 = sand.u32 %s74, 1
        %s294 = smul.addr %s293, 128
        %s295 = scalar_lea.vmem [#allocation5], %s294
        // Predicated region
        $region45: #{tpu_custom_call.1} parent=39 // pred_check
          %p296 = pneg %p87
        $region46: #{tpu_custom_call.1} parent=39 // pred_check_branch
          %298 = sbr.rel (%p296) target = $region48
        $region47: #{tpu_custom_call.1} parent=39 // pred_region
          %300 = dma.done %s292, 2048
        $region48: #{tpu_custom_call.1} parent=39 // pred_fallthru
          _
        // Predicated region
        $region49: #{tpu_custom_call.1} parent=39 // pred_check
          %p301 = pneg %p108
        $region50: #{tpu_custom_call.1} parent=39 // pred_check_branch
          %303 = sbr.rel (%p301) target = $region52
        $region51: #{tpu_custom_call.1} parent=39 // pred_region
          %305 = dma.done [#allocation6], 2048
        $region52: #{tpu_custom_call.1} parent=39 // pred_fallthru
          _
        // Predicated region
        $region53: #{tpu_custom_call.1} parent=39 // pred_check
          %p306 = pneg %p129
        $region54: #{tpu_custom_call.1} parent=39 // pred_check_branch
          %308 = sbr.rel (%p306) target = $region56
        $region55: #{tpu_custom_call.1} parent=39 // pred_region
          %310 = dma.done [#allocation9], 2048
        $region56: #{tpu_custom_call.1} parent=39 // pred_fallthru
          _
        %s311 = sand.u32 %s46, 1
        %s312 = scalar_lea.sflag [#allocation3], %s311
        %s313 = sand.u32 %s46, 1
        %s314 = smul.addr %s313, 128
        %s315 = scalar_lea.vmem [#allocation2], %s314
        %p316 = pneg %p59
        %p317 = pneg %p56
        %s318 = sand.u32 %s26, 1
        %s319 = scalar_lea.sflag [#allocation6], %s318
        %s320 = sand.u32 %s74, 1
        %s321 = smul.addr %s320, 128
        %s322 = scalar_lea.vmem [#allocation5], %s321
        %p323 = pneg %p87
        %p324 = pneg %p84
        %p325 = pneg %p108
        %p326 = pneg %p105
        %p327 = pneg %p129
        %p328 = pneg %p126
        %p329 = pneg %p150
        %p330 = pneg %p147
        %p331 = pneg %p178
        %p332 = pneg %p175
        %s333 = sand.u32 %s165, 1
        %s334 = scalar_lea.sflag [#allocation4], %s333
        %s335 = sand.u32 %s165, 1
        %s336 = smul.addr %s335, 128
        %s337 = scalar_lea.vmem [#allocation10], %s336
        %s338 = smul.u32 16, %s31
        %s339 = smul.u32 16, %s31
        %v340 = vld [vmem:[%s285] sm:$0xff]
        %v341 = vld [vmem:[%s285 + $0x8] sm:$0xff]
        %v342 = vld [vmem:[%s285 + $0x10] sm:$0xff]
        %v343 = vld [vmem:[%s285 + $0x18] sm:$0xff]
        %v344 = vld [vmem:[%s285 + $0x20] sm:$0xff]
        %v345 = vld [vmem:[%s285 + $0x28] sm:$0xff]
        %v346 = vld [vmem:[%s285 + $0x30] sm:$0xff]
        %v347 = vld [vmem:[%s285 + $0x38] sm:$0xff]
        %v348 = vld [vmem:[%s285 + $0x40] sm:$0xff]
        %v349 = vld [vmem:[%s285 + $0x48] sm:$0xff]
        %v350 = vld [vmem:[%s285 + $0x50] sm:$0xff]
        %v351 = vld [vmem:[%s285 + $0x58] sm:$0xff]
        %v352 = vld [vmem:[%s285 + $0x60] sm:$0xff]
        %v353 = vld [vmem:[%s285 + $0x68] sm:$0xff]
        %v354 = vld [vmem:[%s285 + $0x70] sm:$0xff]
        %v355 = vld [vmem:[%s285 + $0x78] sm:$0xff]
        %v356 = vld [vmem:[%s295] sm:$0xff]
        %v357 = vld [vmem:[%s295 + $0x8] sm:$0xff]
        %v358 = vld [vmem:[%s295 + $0x10] sm:$0xff]
        %v359 = vld [vmem:[%s295 + $0x18] sm:$0xff]
        %v360 = vld [vmem:[%s295 + $0x20] sm:$0xff]
        %v361 = vld [vmem:[%s295 + $0x28] sm:$0xff]
        %v362 = vld [vmem:[%s295 + $0x30] sm:$0xff]
        %v363 = vld [vmem:[%s295 + $0x38] sm:$0xff]
        %v364 = vld [vmem:[%s295 + $0x40] sm:$0xff]
        %v365 = vld [vmem:[%s295 + $0x48] sm:$0xff]
        %v366 = vld [vmem:[%s295 + $0x50] sm:$0xff]
        %v367 = vld [vmem:[%s295 + $0x58] sm:$0xff]
        %v368 = vld [vmem:[%s295 + $0x60] sm:$0xff]
        %v369 = vld [vmem:[%s295 + $0x68] sm:$0xff]
        %v370 = vld [vmem:[%s295 + $0x70] sm:$0xff]
        %v371 = vld [vmem:[%s295 + $0x78] sm:$0xff]
        %372 = vmatpush.msra.mxu0 %v355
        %373 = vmatpush.msra.mxu0 %v354
        %374 = vmatpush.msra.mxu0 %v353
        %375 = vmatpush.msra.mxu0 %v352
        %376 = vmatpush.msra.mxu0 %v351
        %377 = vmatpush.msra.mxu0 %v350
        %378 = vmatpush.msra.mxu0 %v349
        %379 = vmatpush.msra.mxu0 %v348
        %380 = vmatpush.msra.mxu0 %v347
        %381 = vmatpush.msra.mxu0 %v346
        %382 = vmatpush.msra.mxu0 %v345
        %383 = vmatpush.msra.mxu0 %v344
        %384 = vmatpush.msra.mxu0 %v343
        %385 = vmatpush.msra.mxu0 %v342
        %386 = vmatpush.msra.mxu0 %v341
        %387 = vmatpush.msra.mxu0 %v340
        %388 = vmatmul.f32.gmra.mxu0 %v356
        %v389 = vpop.f32.mrf.mxu0
        %v390 = vadd.f32 0.0, %v389
        %391 = vmatmul.f32.gmra.mxu0 %v357
        %v392 = vpop.f32.mrf.mxu0
        %v393 = vadd.f32 0.0, %v392
        %394 = vmatmul.f32.gmra.mxu0 %v358
        %v395 = vpop.f32.mrf.mxu0
        %v396 = vadd.f32 0.0, %v395
        %397 = vmatmul.f32.gmra.mxu0 %v359
        %v398 = vpop.f32.mrf.mxu0
        %v399 = vadd.f32 0.0, %v398
        %400 = vmatmul.f32.gmra.mxu0 %v360
        %v401 = vpop.f32.mrf.mxu0
        %v402 = vadd.f32 0.0, %v401
        %403 = vmatmul.f32.gmra.mxu0 %v361
        %v404 = vpop.f32.mrf.mxu0
        %v405 = vadd.f32 0.0, %v404
        %406 = vmatmul.f32.gmra.mxu0 %v362
        %v407 = vpop.f32.mrf.mxu0
        %v408 = vadd.f32 0.0, %v407
        %409 = vmatmul.f32.gmra.mxu0 %v363
        %v410 = vpop.f32.mrf.mxu0
        %v411 = vadd.f32 0.0, %v410
        %412 = vmatmul.f32.gmra.mxu0 %v364
        %v413 = vpop.f32.mrf.mxu0
        %v414 = vadd.f32 0.0, %v413
        %415 = vmatmul.f32.gmra.mxu0 %v365
        %v416 = vpop.f32.mrf.mxu0
        %v417 = vadd.f32 0.0, %v416
        %418 = vmatmul.f32.gmra.mxu0 %v366
        %v419 = vpop.f32.mrf.mxu0
        %v420 = vadd.f32 0.0, %v419
        %421 = vmatmul.f32.gmra.mxu0 %v367
        %v422 = vpop.f32.mrf.mxu0
        %v423 = vadd.f32 0.0, %v422
        %424 = vmatmul.f32.gmra.mxu0 %v368
        %v425 = vpop.f32.mrf.mxu0
        %v426 = vadd.f32 0.0, %v425
        %427 = vmatmul.f32.gmra.mxu0 %v369
        %v428 = vpop.f32.mrf.mxu0
        %v429 = vadd.f32 0.0, %v428
        %430 = vmatmul.f32.gmra.mxu0 %v370
        %v431 = vpop.f32.mrf.mxu0
        %v432 = vadd.f32 0.0, %v431
        %433 = vmatmul.f32.gmra.mxu0 %v371
        %v434 = vpop.f32.mrf.mxu0
        %v435 = vadd.f32 0.0, %v434
        %436 = vdwg.mxu0
        %s437 = smul.u32 %s31, 128
        %s438 = scalar_lea.vmem %s285, %s437 [#allocation2]
        %v439 = vld [vmem:[%s438] sm:$0xff]
        %v440 = vld [vmem:[%s438 + $0x8] sm:$0xff]
        %v441 = vld [vmem:[%s438 + $0x10] sm:$0xff]
        %v442 = vld [vmem:[%s438 + $0x18] sm:$0xff]
        %v443 = vld [vmem:[%s438 + $0x20] sm:$0xff]
        %v444 = vld [vmem:[%s438 + $0x28] sm:$0xff]
        %v445 = vld [vmem:[%s438 + $0x30] sm:$0xff]
        %v446 = vld [vmem:[%s438 + $0x38] sm:$0xff]
        %v447 = vld [vmem:[%s438 + $0x40] sm:$0xff]
        %v448 = vld [vmem:[%s438 + $0x48] sm:$0xff]
        %v449 = vld [vmem:[%s438 + $0x50] sm:$0xff]
        %v450 = vld [vmem:[%s438 + $0x58] sm:$0xff]
        %v451 = vld [vmem:[%s438 + $0x60] sm:$0xff]
        %v452 = vld [vmem:[%s438 + $0x68] sm:$0xff]
        %v453 = vld [vmem:[%s438 + $0x70] sm:$0xff]
        %v454 = vld [vmem:[%s438 + $0x78] sm:$0xff]
        %v455 = vld [vmem:[#allocation7] sm:$0xff]
        %v456 = vld [vmem:[#allocation7 + $0x8] sm:$0xff]
        %v457 = vld [vmem:[#allocation7 + $0x10] sm:$0xff]
        %v458 = vld [vmem:[#allocation7 + $0x18] sm:$0xff]
        %v459 = vld [vmem:[#allocation7 + $0x20] sm:$0xff]
        %v460 = vld [vmem:[#allocation7 + $0x28] sm:$0xff]
        %v461 = vld [vmem:[#allocation7 + $0x30] sm:$0xff]
        %v462 = vld [vmem:[#allocation7 + $0x38] sm:$0xff]
        %v463 = vld [vmem:[#allocation7 + $0x40] sm:$0xff]
        %v464 = vld [vmem:[#allocation7 + $0x48] sm:$0xff]
        %v465 = vld [vmem:[#allocation7 + $0x50] sm:$0xff]
        %v466 = vld [vmem:[#allocation7 + $0x58] sm:$0xff]
        %v467 = vld [vmem:[#allocation7 + $0x60] sm:$0xff]
        %v468 = vld [vmem:[#allocation7 + $0x68] sm:$0xff]
        %v469 = vld [vmem:[#allocation7 + $0x70] sm:$0xff]
        %v470 = vld [vmem:[#allocation7 + $0x78] sm:$0xff]
        %v471 = vld [vmem:[#allocation8] sm:$0xff]
        %v472 = vld [vmem:[#allocation8 + $0x8] sm:$0xff]
        %v473 = vld [vmem:[#allocation8 + $0x10] sm:$0xff]
        %v474 = vld [vmem:[#allocation8 + $0x18] sm:$0xff]
        %v475 = vld [vmem:[#allocation8 + $0x20] sm:$0xff]
        %v476 = vld [vmem:[#allocation8 + $0x28] sm:$0xff]
        %v477 = vld [vmem:[#allocation8 + $0x30] sm:$0xff]
        %v478 = vld [vmem:[#allocation8 + $0x38] sm:$0xff]
        %v479 = vld [vmem:[#allocation8 + $0x40] sm:$0xff]
        %v480 = vld [vmem:[#allocation8 + $0x48] sm:$0xff]
        %v481 = vld [vmem:[#allocation8 + $0x50] sm:$0xff]
        %v482 = vld [vmem:[#allocation8 + $0x58] sm:$0xff]
        %v483 = vld [vmem:[#allocation8 + $0x60] sm:$0xff]
        %v484 = vld [vmem:[#allocation8 + $0x68] sm:$0xff]
        %v485 = vld [vmem:[#allocation8 + $0x70] sm:$0xff]
        %v486 = vld [vmem:[#allocation8 + $0x78] sm:$0xff]
        %487 = vmatpush.msra.mxu0 %v486
        %488 = vmatpush.msra.mxu0 %v485
        %489 = vmatpush.msra.mxu0 %v484
        %490 = vmatpush.msra.mxu0 %v483
        %491 = vmatpush.msra.mxu0 %v482
        %492 = vmatpush.msra.mxu0 %v481
        %493 = vmatpush.msra.mxu0 %v480
        %494 = vmatpush.msra.mxu0 %v479
        %495 = vmatpush.msra.mxu0 %v478
        %496 = vmatpush.msra.mxu0 %v477
        %497 = vmatpush.msra.mxu0 %v476
        %498 = vmatpush.msra.mxu0 %v475
        %499 = vmatpush.msra.mxu0 %v474
        %500 = vmatpush.msra.mxu0 %v473
        %501 = vmatpush.msra.mxu0 %v472
        %502 = vmatpush.msra.mxu0 %v471
        %503 = vmatmul.f32.gmra.mxu0 %v390
        %v504 = vpop.f32.mrf.mxu0
        %v505 = vadd.f32 0.0, %v504
        %506 = vmatmul.f32.gmra.mxu0 %v393
        %v507 = vpop.f32.mrf.mxu0
        %v508 = vadd.f32 0.0, %v507
        %509 = vmatmul.f32.gmra.mxu0 %v396
        %v510 = vpop.f32.mrf.mxu0
        %v511 = vadd.f32 0.0, %v510
        %512 = vmatmul.f32.gmra.mxu0 %v399
        %v513 = vpop.f32.mrf.mxu0
        %v514 = vadd.f32 0.0, %v513
        %515 = vmatmul.f32.gmra.mxu0 %v402
        %v516 = vpop.f32.mrf.mxu0
        %v517 = vadd.f32 0.0, %v516
        %518 = vmatmul.f32.gmra.mxu0 %v405
        %v519 = vpop.f32.mrf.mxu0
        %v520 = vadd.f32 0.0, %v519
        %521 = vmatmul.f32.gmra.mxu0 %v408
        %v522 = vpop.f32.mrf.mxu0
        %v523 = vadd.f32 0.0, %v522
        %524 = vmatmul.f32.gmra.mxu0 %v411
        %v525 = vpop.f32.mrf.mxu0
        %v526 = vadd.f32 0.0, %v525
        %527 = vmatmul.f32.gmra.mxu0 %v414
        %v528 = vpop.f32.mrf.mxu0
        %v529 = vadd.f32 0.0, %v528
        %530 = vmatmul.f32.gmra.mxu0 %v417
        %v531 = vpop.f32.mrf.mxu0
        %v532 = vadd.f32 0.0, %v531
        %533 = vmatmul.f32.gmra.mxu0 %v420
        %v534 = vpop.f32.mrf.mxu0
        %v535 = vadd.f32 0.0, %v534
        %536 = vmatmul.f32.gmra.mxu0 %v423
        %v537 = vpop.f32.mrf.mxu0
        %v538 = vadd.f32 0.0, %v537
        %539 = vmatmul.f32.gmra.mxu0 %v426
        %v540 = vpop.f32.mrf.mxu0
        %v541 = vadd.f32 0.0, %v540
        %542 = vmatmul.f32.gmra.mxu0 %v429
        %v543 = vpop.f32.mrf.mxu0
        %v544 = vadd.f32 0.0, %v543
        %545 = vmatmul.f32.gmra.mxu0 %v432
        %v546 = vpop.f32.mrf.mxu0
        %v547 = vadd.f32 0.0, %v546
        %548 = vmatmul.f32.gmra.mxu0 %v435
        %v549 = vpop.f32.mrf.mxu0
        %v550 = vadd.f32 0.0, %v549
        %551 = vdwg.mxu0
        %552 = vmatpush.msra.mxu0 %v470
        %553 = vmatpush.msra.mxu0 %v469
        %554 = vmatpush.msra.mxu0 %v468
        %555 = vmatpush.msra.mxu0 %v467
        %556 = vmatpush.msra.mxu0 %v466
        %557 = vmatpush.msra.mxu0 %v465
        %558 = vmatpush.msra.mxu0 %v464
        %559 = vmatpush.msra.mxu0 %v463
        %560 = vmatpush.msra.mxu0 %v462
        %561 = vmatpush.msra.mxu0 %v461
        %562 = vmatpush.msra.mxu0 %v460
        %563 = vmatpush.msra.mxu0 %v459
        %564 = vmatpush.msra.mxu0 %v458
        %565 = vmatpush.msra.mxu0 %v457
        %566 = vmatpush.msra.mxu0 %v456
        %567 = vmatpush.msra.mxu0 %v455
        %568 = vmatmul.f32.gmra.mxu0 %v439
        %v569 = vpop.f32.mrf.mxu0
        %v570 = vadd.f32 %v505, %v569
        %571 = vmatmul.f32.gmra.mxu0 %v440
        %v572 = vpop.f32.mrf.mxu0
        %v573 = vadd.f32 %v508, %v572
        %574 = vmatmul.f32.gmra.mxu0 %v441
        %v575 = vpop.f32.mrf.mxu0
        %v576 = vadd.f32 %v511, %v575
        %577 = vmatmul.f32.gmra.mxu0 %v442
        %v578 = vpop.f32.mrf.mxu0
        %v579 = vadd.f32 %v514, %v578
        %580 = vmatmul.f32.gmra.mxu0 %v443
        %v581 = vpop.f32.mrf.mxu0
        %v582 = vadd.f32 %v517, %v581
        %583 = vmatmul.f32.gmra.mxu0 %v444
        %v584 = vpop.f32.mrf.mxu0
        %v585 = vadd.f32 %v520, %v584
        %586 = vmatmul.f32.gmra.mxu0 %v445
        %v587 = vpop.f32.mrf.mxu0
        %v588 = vadd.f32 %v523, %v587
        %589 = vmatmul.f32.gmra.mxu0 %v446
        %v590 = vpop.f32.mrf.mxu0
        %v591 = vadd.f32 %v526, %v590
        %592 = vmatmul.f32.gmra.mxu0 %v447
        %v593 = vpop.f32.mrf.mxu0
        %v594 = vadd.f32 %v529, %v593
        %595 = vmatmul.f32.gmra.mxu0 %v448
        %v596 = vpop.f32.mrf.mxu0
        %v597 = vadd.f32 %v532, %v596
        %598 = vmatmul.f32.gmra.mxu0 %v449
        %v599 = vpop.f32.mrf.mxu0
        %v600 = vadd.f32 %v535, %v599
        %601 = vmatmul.f32.gmra.mxu0 %v450
        %v602 = vpop.f32.mrf.mxu0
        %v603 = vadd.f32 %v538, %v602
        %604 = vmatmul.f32.gmra.mxu0 %v451
        %v605 = vpop.f32.mrf.mxu0
        %v606 = vadd.f32 %v541, %v605
        %607 = vmatmul.f32.gmra.mxu0 %v452
        %v608 = vpop.f32.mrf.mxu0
        %v609 = vadd.f32 %v544, %v608
        %610 = vmatmul.f32.gmra.mxu0 %v453
        %v611 = vpop.f32.mrf.mxu0
        %v612 = vadd.f32 %v547, %v611
        %613 = vmatmul.f32.gmra.mxu0 %v454
        %v614 = vpop.f32.mrf.mxu0
        %v615 = vadd.f32 %v550, %v614
        %616 = vdwg.mxu0
        %v617 = vld [vmem:[%s4] sm:$0x1]
        %v619 = vperm.slane %v617, 0
        %v621 = vadd.f32 %v570, %v619
        %v622 = vadd.f32 %v573, %v619
        %v623 = vadd.f32 %v576, %v619
        %v624 = vadd.f32 %v579, %v619
        %v625 = vadd.f32 %v582, %v619
        %v626 = vadd.f32 %v585, %v619
        %v627 = vadd.f32 %v588, %v619
        %v628 = vadd.f32 %v591, %v619
        %v629 = vadd.f32 %v594, %v619
        %v630 = vadd.f32 %v597, %v619
        %v631 = vadd.f32 %v600, %v619
        %v632 = vadd.f32 %v603, %v619
        %v633 = vadd.f32 %v606, %v619
        %v634 = vadd.f32 %v609, %v619
        %v635 = vadd.f32 %v612, %v619
        %v636 = vadd.f32 %v615, %v619
        %v637 = vmax.f32 %v621, 0.0
        %v638 = vmax.f32 %v622, 0.0
        %v639 = vmax.f32 %v623, 0.0
        %v640 = vmax.f32 %v624, 0.0
        %v641 = vmax.f32 %v625, 0.0
        %v642 = vmax.f32 %v626, 0.0
        %v643 = vmax.f32 %v627, 0.0
        %v644 = vmax.f32 %v628, 0.0
        %v645 = vmax.f32 %v629, 0.0
        %v646 = vmax.f32 %v630, 0.0
        %v647 = vmax.f32 %v631, 0.0
        %v648 = vmax.f32 %v632, 0.0
        %v649 = vmax.f32 %v633, 0.0
        %v650 = vmax.f32 %v634, 0.0
        %v651 = vmax.f32 %v635, 0.0
        %v652 = vmax.f32 %v636, 0.0
        %653 = vst [vmem:[%s337] sm:$0xff] %v637
        %654 = vst [vmem:[%s337 + $0x8] sm:$0xff] %v638
        %655 = vst [vmem:[%s337 + $0x10] sm:$0xff] %v639
        %656 = vst [vmem:[%s337 + $0x18] sm:$0xff] %v640
        %657 = vst [vmem:[%s337 + $0x20] sm:$0xff] %v641
        %658 = vst [vmem:[%s337 + $0x28] sm:$0xff] %v642
        %659 = vst [vmem:[%s337 + $0x30] sm:$0xff] %v643
        %660 = vst [vmem:[%s337 + $0x38] sm:$0xff] %v644
        %661 = vst [vmem:[%s337 + $0x40] sm:$0xff] %v645
        %662 = vst [vmem:[%s337 + $0x48] sm:$0xff] %v646
        %663 = vst [vmem:[%s337 + $0x50] sm:$0xff] %v647
        %664 = vst [vmem:[%s337 + $0x58] sm:$0xff] %v648
        %665 = vst [vmem:[%s337 + $0x60] sm:$0xff] %v649
        %666 = vst [vmem:[%s337 + $0x68] sm:$0xff] %v650
        %667 = vst [vmem:[%s337 + $0x70] sm:$0xff] %v651
        %668 = vst [vmem:[%s337 + $0x78] sm:$0xff] %v652
        %s669 = sand.u32 %s165, 1
        %s670 = scalar_lea.sflag [#allocation4], %s669
        %s671 = sand.u32 %s165, 1
        %s672 = smul.addr %s671, 128
        %s673 = scalar_lea.vmem [#allocation10], %s672
        // Predicated region
        $region57: #{tpu_custom_call.1} parent=39 // pred_check
          %p674 = pneg %p175
        $region58: #{tpu_custom_call.1} parent=39 // pred_check_branch
          %676 = sbr.rel (%p674) target = $region60
        $region59: #{tpu_custom_call.1} parent=39 // pred_region
          %s677 = smul.u32 16, %s31
          %679 = vsyncadd %s670, 0
          %s680 = smul.addr %s30, 16
          %s681 = sadd.s32 %s677, %s680
          %s682 = smul.addr %s681, 8
          %s683 = scalar_lea.hbm %s5, %s682
          %s684 = sshll.u32 %s673, 4
          %s685 = int_to_ptr.vmem [resolvable:$true] %s684
          %s686 = sshll.u32 %s683, 4
          %s687 = int_to_ptr.hbm [resolvable:$true] %s686
          %692 = dma.vmem_to_hbm [thread:$0]  %s685, 2048, %s687, %s670, 128, 128, 8
        $region60: #{tpu_custom_call.1} parent=39 // pred_fallthru
          _
      $region40: #{tpu_custom_call.1} parent=5 // pred_fallthru
        _
      %p693 = scmp.le.s32.totalorder 2, %s21
      // Predicated region
      $region61: #{tpu_custom_call.1} parent=5 // pred_check
        %p694 = pneg %p693
      $region62: #{tpu_custom_call.1} parent=5 // pred_check_branch
        %696 = sbr.rel (%p694) target = $region64
      $region63: #{tpu_custom_call.1} parent=5 // pred_region
        %s697 = ssub.s32 %s21, 2
        // Predicated region
        $region65: #{tpu_custom_call.1} parent=63 // pred_check
          %p698 = pneg %p181
        $region66: #{tpu_custom_call.1} parent=63 // pred_check_branch
          %700 = sbr.rel (%p698) target = $region68
        $region67: #{tpu_custom_call.1} parent=63 // pred_region
          %s701 = sand.u32 %s166, 1
          %s702 = scalar_lea.sflag [#allocation4], %s701
          %s703 = sand.u32 %s166, 1
          %s704 = smul.addr %s703, 128
          %s705 = scalar_lea.vmem [#allocation10], %s704
          %707 = dma.done %s702, 2048
        $region68: #{tpu_custom_call.1} parent=63 // pred_fallthru
          _
      $region64: #{tpu_custom_call.1} parent=5 // pred_fallthru
        _
    $region6: #{tpu_custom_call.1} parent=1 // loop_footer
      %s25 = sadd.s32 1, %s21
    $region7: #{tpu_custom_call.1} parent=1 // loop_footer_branch
      %20 = sbr.rel target = $region3
    $region8: #{tpu_custom_call.1} parent=1 // loop_exit
      _
    %708 = vsyncpa [#allocation3], 1
    %s709 = scalar_lea.sflag [#allocation3], 1
    %710 = vsyncpa %s709, 1
    %711 = vsyncpa [#allocation6], 1
    %s712 = scalar_lea.sflag [#allocation6], 1
    %713 = vsyncpa %s712, 1
    %714 = vsyncpa [#allocation9], 1
    %715 = vsyncpa [#allocation4], 1
    %s716 = scalar_lea.sflag [#allocation4], 1
    %717 = vsyncpa %s716, 1

</llo_original>
